<compile_context>
chip_gen: v7x
topology: tpu7x:2x2x1
jax: 0.10.0
libtpu: 0.0.40
codegen_flags: <defaults>
</compile_context>

<pallas_src>
import functools

import jax
import jax.numpy as jnp
from jax.experimental import pallas as pl
from jax.experimental.pallas import tpu as pltpu

LN_EPS = 1e-5


# ---------------------------------------------------------------------------
# Fused decoder-layer kernel
# ---------------------------------------------------------------------------
def _ln_f32(x, g, b):
    mean = jnp.mean(x, axis=-1, keepdims=True)
    xc = x - mean
    var = jnp.mean(xc * xc, axis=-1, keepdims=True)
    return xc * jax.lax.rsqrt(var + LN_EPS) * g + b


def _opt_layer_kernel(x_ref,
                      ln1g_ref, ln1b_ref,
                      qkvw_ref, qkvb_ref,
                      outw_ref, outb_ref,
                      ln2g_ref, ln2b_ref,
                      fc1w_ref, fc1b_ref,
                      fc2w_ref, fc2b_ref,
                      out_ref, res_ref,
                      *, num_heads, scale, mxu_dtype):
    x = x_ref[...].astype(jnp.float32)                      # (S, E)
    S, E = x.shape
    D = E // num_heads

    def mm(a, b):
        # bf16 MXU inputs, f32 accumulation.
        return jnp.dot(a.astype(mxu_dtype), b.astype(mxu_dtype),
                       preferred_element_type=jnp.float32)

    # ---------------- self-attention block (pre-norm) ----------------
    h = _ln_f32(x, ln1g_ref[...].astype(jnp.float32),
                ln1b_ref[...].astype(jnp.float32))
    qkv = mm(h, qkvw_ref[...]) + qkvb_ref[...].astype(jnp.float32)   # (S, 3E)

    # Causal mask built once, reused by every head.
    row = jax.lax.broadcasted_iota(jnp.int32, (S, S), 0)
    col = jax.lax.broadcasted_iota(jnp.int32, (S, S), 1)
    causal = col <= row
    neg = jnp.finfo(jnp.float32).min

    head_outs = []
    for hd in range(num_heads):                   # static unrolled head loop
        q = qkv[:, hd * D:(hd + 1) * D] * scale                     # (S, D)
        k = qkv[:, E + hd * D:E + (hd + 1) * D]                     # (S, D)
        v = qkv[:, 2 * E + hd * D:2 * E + (hd + 1) * D]             # (S, D)
        # s = q @ k.T  (contract on head_dim, no explicit transpose)
        s = jax.lax.dot_general(q.astype(mxu_dtype), k.astype(mxu_dtype),
                                (((1,), (1,)), ((), ())),
                                preferred_element_type=jnp.float32)  # (S, S)
        s = jnp.where(causal, s, neg)
        m = jnp.max(s, axis=-1, keepdims=True)
        p = jnp.exp(s - m)
        denom = jnp.sum(p, axis=-1, keepdims=True)
        o = mm(p, v) * pl.reciprocal(denom, approx=True)             # (S, D)
        head_outs.append(o)
    attn = jnp.concatenate(head_outs, axis=-1)    # (S, E) lane-dense

    attn_out = (mm(attn, outw_ref[...]) +
                outb_ref[...].astype(jnp.float32) + x)               # + residual
    res_ref[...] = attn_out.astype(res_ref.dtype)

    # ---------------- MLP block (pre-norm) ----------------
    h2 = _ln_f32(attn_out, ln2g_ref[...].astype(jnp.float32),
                 ln2b_ref[...].astype(jnp.float32))
    h2 = mm(h2, fc1w_ref[...]) + fc1b_ref[...].astype(jnp.float32)
    h2 = jnp.maximum(h2, 0.0)                                        # ReLU
    y = (mm(h2, fc2w_ref[...]) +
         fc2b_ref[...].astype(jnp.float32) + attn_out)               # + residual
    out_ref[...] = y.astype(out_ref.dtype)


# ---------------------------------------------------------------------------
# Wrapper
# ---------------------------------------------------------------------------
def opt_decoder_layer(hidden_states, params, num_heads,
                      mxu_dtype=jnp.bfloat16):
    S, E = hidden_states.shape
    F = params["fc1_w"].shape[1]
    head_dim = E // num_heads
    scale = head_dim ** -0.5

    def full(shape):
        nd = len(shape)
        return pl.BlockSpec(shape, lambda: (0,) * nd)

    kern = functools.partial(_opt_layer_kernel, num_heads=num_heads,
                             scale=scale, mxu_dtype=mxu_dtype)

    args = (
        hidden_states,
        params["ln1_g"].reshape(1, E), params["ln1_b"].reshape(1, E),
        params["qkv_w"], params["qkv_b"].reshape(1, 3 * E),
        params["out_w"], params["out_b"].reshape(1, E),
        params["ln2_g"].reshape(1, E), params["ln2_b"].reshape(1, E),
        params["fc1_w"], params["fc1_b"].reshape(1, F),
        params["fc2_w"], params["fc2_b"].reshape(1, E),
    )

    return pl.pallas_call(
        kern,
        out_shape=(jax.ShapeDtypeStruct((S, E), hidden_states.dtype),
                   jax.ShapeDtypeStruct((S, E), hidden_states.dtype)),
        in_specs=[full(a.shape) for a in args],
        out_specs=(full((S, E)), full((S, E))),
        compiler_params=pltpu.CompilerParams(
            vmem_limit_bytes=32 * 1024 * 1024),
    )(*args)


# ---------------------------------------------------------------------------
# Pure-JAX references (for verification)
# ---------------------------------------------------------------------------
def opt_decoder_layer_ref(x, p, num_heads, mxu_dtype=None):
    """mxu_dtype=None -> full f32; otherwise mirrors the kernel's mixed precision."""
    S, E = x.shape
    D = E // num_heads
    scale = D ** -0.5
    cast = (lambda t: t) if mxu_dtype is None else (lambda t: t.astype(mxu_dtype))

    def mm(a, b):
        return jnp.dot(cast(a), cast(b), preferred_element_type=jnp.float32)

    def ln(t, g, b):
        m = jnp.mean(t, -1, keepdims=True)
        v = jnp.mean((t - m) ** 2, -1, keepdims=True)
        return (t - m) / jnp.sqrt(v + LN_EPS) * g + b

    x = x.astype(jnp.float32)
    residual = x
    h = ln(x, p["ln1_g"], p["ln1_b"])
    qkv = mm(h, p["qkv_w"]) + p["qkv_b"]
    q, k, v = jnp.split(qkv, 3, axis=-1)
    q = q.reshape(S, num_heads, D).transpose(1, 0, 2) * scale
    k = k.reshape(S, num_heads, D).transpose(1, 0, 2)
    v = v.reshape(S, num_heads, D).transpose(1, 0, 2)
    s = jnp.einsum("hqd,hkd->hqk", cast(q), cast(k),
                   preferred_element_type=jnp.float32)
    mask = jnp.tril(jnp.ones((S, S), bool))
    s = jnp.where(mask[None], s, jnp.finfo(jnp.float32).min)
    a = jax.nn.softmax(s, axis=-1)
    o = jnp.einsum("hqk,hkd->hqd", cast(a), cast(v),
                   preferred_element_type=jnp.float32)
    o = o.transpose(1, 0, 2).reshape(S, E)
    h = mm(o, p["out_w"]) + p["out_b"] + residual

    residual = h
    h2 = ln(h, p["ln2_g"], p["ln2_b"])
    h2 = jnp.maximum(mm(h2, p["fc1_w"]) + p["fc1_b"], 0.0)
    h2 = mm(h2, p["fc2_w"]) + p["fc2_b"] + residual
    return h2, residual


# ---------------------------------------------------------------------------
if __name__ == "__main__":
    SEQ, HIDDEN, HEADS, FFN = 8, 32, 4, 128

    key = jax.random.PRNGKey(0)
    keys = jax.random.split(key, 10)

    def init(k, shape, scl=0.05):
        return jax.random.normal(k, shape, jnp.float32) * scl

    params = {
        "ln1_g": jnp.ones((HIDDEN,), jnp.float32),
        "ln1_b": jnp.zeros((HIDDEN,), jnp.float32),
        "qkv_w": init(keys[0], (HIDDEN, 3 * HIDDEN)),
        "qkv_b": init(keys[1], (3 * HIDDEN,)),
        "out_w": init(keys[2], (HIDDEN, HIDDEN)),
        "out_b": init(keys[3], (HIDDEN,)),
        "ln2_g": jnp.ones((HIDDEN,), jnp.float32),
        "ln2_b": jnp.zeros((HIDDEN,), jnp.float32),
        "fc1_w": init(keys[4], (HIDDEN, FFN)),
        "fc1_b": init(keys[5], (FFN,)),
        "fc2_w": init(keys[6], (FFN, HIDDEN)),
        "fc2_b": init(keys[7], (HIDDEN,)),
    }

    x = jax.random.normal(keys[8], (SEQ, HIDDEN), jnp.float32)

    out, res = opt_decoder_layer(x, params, HEADS)
    out = jax.block_until_ready(out)
    res = jax.block_until_ready(res)

    # Strict check against a reference that mirrors the kernel's mixed precision.
    out_mx, res_mx = opt_decoder_layer_ref(x, params, HEADS,
                                           mxu_dtype=jnp.bfloat16)
    assert jnp.allclose(out, out_mx, atol=2e-3, rtol=2e-3), "output mismatch (mixed ref)"
    assert jnp.allclose(res, res_mx, atol=2e-3, rtol=2e-3), "residual mismatch (mixed ref)"

    # Looser sanity check against the pure-f32 reference (bf16 MXU inputs).
    out_f32, res_f32 = opt_decoder_layer_ref(x, params, HEADS, mxu_dtype=None)
    assert jnp.allclose(out, out_f32, atol=3e-2, rtol=3e-2), "output mismatch (f32 ref)"
    assert jnp.allclose(res, res_f32, atol=3e-2, rtol=3e-2), "residual mismatch (f32 ref)"

    print("KERNEL_OK")
</pallas_src>

<mosaic_0001>
module attributes {stable_mosaic.version = 11 : i64} {
  func.func @_opt_layer_kernel(%arg0: memref<8x32xf32, #tpu.memory_space<vmem>>, %arg1: memref<1x32xf32, #tpu.memory_space<vmem>>, %arg2: memref<1x32xf32, #tpu.memory_space<vmem>>, %arg3: memref<32x96xf32, #tpu.memory_space<vmem>>, %arg4: memref<1x96xf32, #tpu.memory_space<vmem>>, %arg5: memref<32x32xf32, #tpu.memory_space<vmem>>, %arg6: memref<1x32xf32, #tpu.memory_space<vmem>>, %arg7: memref<1x32xf32, #tpu.memory_space<vmem>>, %arg8: memref<1x32xf32, #tpu.memory_space<vmem>>, %arg9: memref<32x128xf32, #tpu.memory_space<vmem>>, %arg10: memref<1x128xf32, #tpu.memory_space<vmem>>, %arg11: memref<128x32xf32, #tpu.memory_space<vmem>>, %arg12: memref<1x32xf32, #tpu.memory_space<vmem>>, %arg13: memref<8x32xf32, #tpu.memory_space<vmem>>, %arg14: memref<8x32xf32, #tpu.memory_space<vmem>>) attributes {dimension_semantics = [], scalar_prefetch = 0 : i64, scratch_operands = 0 : i64, tpu.core_type = #tpu.core_type<tc>} {
    %c0 = arith.constant 0 : index
    %c0_0 = arith.constant 0 : index
    %0 = vector.load %arg0[%c0, %c0_0] : memref<8x32xf32, #tpu.memory_space<vmem>>, vector<8x32xf32>
    %c0_1 = arith.constant 0 : index
    %c0_2 = arith.constant 0 : index
    %1 = vector.load %arg1[%c0_1, %c0_2] : memref<1x32xf32, #tpu.memory_space<vmem>>, vector<1x32xf32>
    %c0_3 = arith.constant 0 : index
    %c0_4 = arith.constant 0 : index
    %2 = vector.load %arg2[%c0_3, %c0_4] : memref<1x32xf32, #tpu.memory_space<vmem>>, vector<1x32xf32>
    %cst = arith.constant dense<0.000000e+00> : vector<8xf32>
    %3 = vector.multi_reduction <add>, %0, %cst [1] : vector<8x32xf32> to vector<8xf32>
    %4 = vector.shape_cast %3 : vector<8xf32> to vector<8x1xf32>
    %cst_5 = arith.constant 3.200000e+01 : f32
    %5 = vector.broadcast %cst_5 : f32 to vector<8x1xf32>
    %6 = arith.divf %4, %5 : vector<8x1xf32>
    %7 = vector.broadcast %6 : vector<8x1xf32> to vector<8x32xf32>
    %8 = arith.subf %0, %7 : vector<8x32xf32>
    %9 = arith.mulf %8, %8 : vector<8x32xf32>
    %cst_6 = arith.constant dense<0.000000e+00> : vector<8xf32>
    %10 = vector.multi_reduction <add>, %9, %cst_6 [1] : vector<8x32xf32> to vector<8xf32>
    %11 = vector.shape_cast %10 : vector<8xf32> to vector<8x1xf32>
    %cst_7 = arith.constant 3.200000e+01 : f32
    %12 = vector.broadcast %cst_7 : f32 to vector<8x1xf32>
    %13 = arith.divf %11, %12 : vector<8x1xf32>
    %cst_8 = arith.constant 9.99999974E-6 : f32
    %14 = vector.broadcast %cst_8 : f32 to vector<8x1xf32>
    %15 = arith.addf %13, %14 : vector<8x1xf32>
    %16 = math.rsqrt %15 : vector<8x1xf32>
    %17 = vector.broadcast %16 : vector<8x1xf32> to vector<8x32xf32>
    %18 = arith.mulf %8, %17 : vector<8x32xf32>
    %19 = vector.broadcast %1 : vector<1x32xf32> to vector<8x32xf32>
    %20 = arith.mulf %18, %19 : vector<8x32xf32>
    %21 = vector.broadcast %2 : vector<1x32xf32> to vector<8x32xf32>
    %22 = arith.addf %20, %21 : vector<8x32xf32>
    %c0_9 = arith.constant 0 : index
    %c0_10 = arith.constant 0 : index
    %23 = vector.load %arg3[%c0_9, %c0_10] : memref<32x96xf32, #tpu.memory_space<vmem>>, vector<32x96xf32>
    %24 = arith.truncf %22 : vector<8x32xf32> to vector<8x32xbf16>
    %25 = arith.truncf %23 : vector<32x96xf32> to vector<32x96xbf16>
    %cst_11 = arith.constant dense<0.000000e+00> : vector<8x96xf32>
    %26 = tpu.matmul %24, %25, %cst_11 {dimension_numbers = #tpu.dot_dimension_numbers<[1], [0], [0], [1], [0, 0, 1, 1], [], []>} : vector<8x32xbf16>, vector<32x96xbf16>, vector<8x96xf32> -> vector<8x96xf32>
    %c0_12 = arith.constant 0 : index
    %c0_13 = arith.constant 0 : index
    %27 = vector.load %arg4[%c0_12, %c0_13] : memref<1x96xf32, #tpu.memory_space<vmem>>, vector<1x96xf32>
    %28 = vector.broadcast %27 : vector<1x96xf32> to vector<8x96xf32>
    %29 = arith.addf %26, %28 : vector<8x96xf32>
    %30 = tpu.iota {dimensions = array<i32: 0>} : vector<8x8xi32>
    %31 = tpu.iota {dimensions = array<i32: 1>} : vector<8x8xi32>
    %32 = arith.cmpi sle, %31, %30 : vector<8x8xi32>
    %33 = vector.extract_strided_slice %29 {offsets = [0, 0], sizes = [8, 8], strides = [1, 1]} : vector<8x96xf32> to vector<8x8xf32>
    %cst_14 = arith.constant 0.353553385 : f32
    %34 = vector.broadcast %cst_14 : f32 to vector<8x8xf32>
    %35 = arith.mulf %33, %34 : vector<8x8xf32>
    %36 = vector.extract_strided_slice %29 {offsets = [0, 32], sizes = [8, 8], strides = [1, 1]} : vector<8x96xf32> to vector<8x8xf32>
    %37 = vector.extract_strided_slice %29 {offsets = [0, 64], sizes = [8, 8], strides = [1, 1]} : vector<8x96xf32> to vector<8x8xf32>
    %38 = arith.truncf %35 : vector<8x8xf32> to vector<8x8xbf16>
    %39 = arith.truncf %36 : vector<8x8xf32> to vector<8x8xbf16>
    %cst_15 = arith.constant dense<0.000000e+00> : vector<8x8xf32>
    %40 = tpu.matmul %38, %39, %cst_15 {dimension_numbers = #tpu.dot_dimension_numbers<[1], [1], [0], [0], [0, 0, 1, 0], [], []>} : vector<8x8xbf16>, vector<8x8xbf16>, vector<8x8xf32> -> vector<8x8xf32>
    %cst_16 = arith.constant -3.40282347E+38 : f32
    %41 = vector.broadcast %cst_16 : f32 to vector<8x8xf32>
    %42 = arith.select %32, %40, %41 : vector<8x8xi1>, vector<8x8xf32>
    %cst_17 = arith.constant dense<0xFF800000> : vector<8xf32>
    %43 = vector.multi_reduction <maximumf>, %42, %cst_17 [1] : vector<8x8xf32> to vector<8xf32>
    %44 = vector.shape_cast %43 : vector<8xf32> to vector<8x1xf32>
    %45 = vector.broadcast %44 : vector<8x1xf32> to vector<8x8xf32>
    %46 = arith.subf %42, %45 : vector<8x8xf32>
    %47 = math.exp %46 : vector<8x8xf32>
    %cst_18 = arith.constant dense<0.000000e+00> : vector<8xf32>
    %48 = vector.multi_reduction <add>, %47, %cst_18 [1] : vector<8x8xf32> to vector<8xf32>
    %49 = vector.shape_cast %48 : vector<8xf32> to vector<8x1xf32>
    %50 = arith.truncf %47 : vector<8x8xf32> to vector<8x8xbf16>
    %51 = arith.truncf %37 : vector<8x8xf32> to vector<8x8xbf16>
    %cst_19 = arith.constant dense<0.000000e+00> : vector<8x8xf32>
    %52 = tpu.matmul %50, %51, %cst_19 {dimension_numbers = #tpu.dot_dimension_numbers<[1], [0], [0], [1], [0, 0, 1, 1], [], []>} : vector<8x8xbf16>, vector<8x8xbf16>, vector<8x8xf32> -> vector<8x8xf32>
    %53 = tpu.reciprocal %49 {approx = true} : vector<8x1xf32> -> vector<8x1xf32>
    %54 = vector.broadcast %53 : vector<8x1xf32> to vector<8x8xf32>
    %55 = arith.mulf %52, %54 : vector<8x8xf32>
    %56 = vector.extract_strided_slice %29 {offsets = [0, 8], sizes = [8, 8], strides = [1, 1]} : vector<8x96xf32> to vector<8x8xf32>
    %cst_20 = arith.constant 0.353553385 : f32
    %57 = vector.broadcast %cst_20 : f32 to vector<8x8xf32>
    %58 = arith.mulf %56, %57 : vector<8x8xf32>
    %59 = vector.extract_strided_slice %29 {offsets = [0, 40], sizes = [8, 8], strides = [1, 1]} : vector<8x96xf32> to vector<8x8xf32>
    %60 = vector.extract_strided_slice %29 {offsets = [0, 72], sizes = [8, 8], strides = [1, 1]} : vector<8x96xf32> to vector<8x8xf32>
    %61 = arith.truncf %58 : vector<8x8xf32> to vector<8x8xbf16>
    %62 = arith.truncf %59 : vector<8x8xf32> to vector<8x8xbf16>
    %cst_21 = arith.constant dense<0.000000e+00> : vector<8x8xf32>
    %63 = tpu.matmul %61, %62, %cst_21 {dimension_numbers = #tpu.dot_dimension_numbers<[1], [1], [0], [0], [0, 0, 1, 0], [], []>} : vector<8x8xbf16>, vector<8x8xbf16>, vector<8x8xf32> -> vector<8x8xf32>
    %cst_22 = arith.constant -3.40282347E+38 : f32
    %64 = vector.broadcast %cst_22 : f32 to vector<8x8xf32>
    %65 = arith.select %32, %63, %64 : vector<8x8xi1>, vector<8x8xf32>
    %cst_23 = arith.constant dense<0xFF800000> : vector<8xf32>
    %66 = vector.multi_reduction <maximumf>, %65, %cst_23 [1] : vector<8x8xf32> to vector<8xf32>
    %67 = vector.shape_cast %66 : vector<8xf32> to vector<8x1xf32>
    %68 = vector.broadcast %67 : vector<8x1xf32> to vector<8x8xf32>
    %69 = arith.subf %65, %68 : vector<8x8xf32>
    %70 = math.exp %69 : vector<8x8xf32>
    %cst_24 = arith.constant dense<0.000000e+00> : vector<8xf32>
    %71 = vector.multi_reduction <add>, %70, %cst_24 [1] : vector<8x8xf32> to vector<8xf32>
    %72 = vector.shape_cast %71 : vector<8xf32> to vector<8x1xf32>
    %73 = arith.truncf %70 : vector<8x8xf32> to vector<8x8xbf16>
    %74 = arith.truncf %60 : vector<8x8xf32> to vector<8x8xbf16>
    %cst_25 = arith.constant dense<0.000000e+00> : vector<8x8xf32>
    %75 = tpu.matmul %73, %74, %cst_25 {dimension_numbers = #tpu.dot_dimension_numbers<[1], [0], [0], [1], [0, 0, 1, 1], [], []>} : vector<8x8xbf16>, vector<8x8xbf16>, vector<8x8xf32> -> vector<8x8xf32>
    %76 = tpu.reciprocal %72 {approx = true} : vector<8x1xf32> -> vector<8x1xf32>
    %77 = vector.broadcast %76 : vector<8x1xf32> to vector<8x8xf32>
    %78 = arith.mulf %75, %77 : vector<8x8xf32>
    %79 = vector.extract_strided_slice %29 {offsets = [0, 16], sizes = [8, 8], strides = [1, 1]} : vector<8x96xf32> to vector<8x8xf32>
    %cst_26 = arith.constant 0.353553385 : f32
    %80 = vector.broadcast %cst_26 : f32 to vector<8x8xf32>
    %81 = arith.mulf %79, %80 : vector<8x8xf32>
    %82 = vector.extract_strided_slice %29 {offsets = [0, 48], sizes = [8, 8], strides = [1, 1]} : vector<8x96xf32> to vector<8x8xf32>
    %83 = vector.extract_strided_slice %29 {offsets = [0, 80], sizes = [8, 8], strides = [1, 1]} : vector<8x96xf32> to vector<8x8xf32>
    %84 = arith.truncf %81 : vector<8x8xf32> to vector<8x8xbf16>
    %85 = arith.truncf %82 : vector<8x8xf32> to vector<8x8xbf16>
    %cst_27 = arith.constant dense<0.000000e+00> : vector<8x8xf32>
    %86 = tpu.matmul %84, %85, %cst_27 {dimension_numbers = #tpu.dot_dimension_numbers<[1], [1], [0], [0], [0, 0, 1, 0], [], []>} : vector<8x8xbf16>, vector<8x8xbf16>, vector<8x8xf32> -> vector<8x8xf32>
    %cst_28 = arith.constant -3.40282347E+38 : f32
    %87 = vector.broadcast %cst_28 : f32 to vector<8x8xf32>
    %88 = arith.select %32, %86, %87 : vector<8x8xi1>, vector<8x8xf32>
    %cst_29 = arith.constant dense<0xFF800000> : vector<8xf32>
    %89 = vector.multi_reduction <maximumf>, %88, %cst_29 [1] : vector<8x8xf32> to vector<8xf32>
    %90 = vector.shape_cast %89 : vector<8xf32> to vector<8x1xf32>
    %91 = vector.broadcast %90 : vector<8x1xf32> to vector<8x8xf32>
    %92 = arith.subf %88, %91 : vector<8x8xf32>
    %93 = math.exp %92 : vector<8x8xf32>
    %cst_30 = arith.constant dense<0.000000e+00> : vector<8xf32>
    %94 = vector.multi_reduction <add>, %93, %cst_30 [1] : vector<8x8xf32> to vector<8xf32>
    %95 = vector.shape_cast %94 : vector<8xf32> to vector<8x1xf32>
    %96 = arith.truncf %93 : vector<8x8xf32> to vector<8x8xbf16>
    %97 = arith.truncf %83 : vector<8x8xf32> to vector<8x8xbf16>
    %cst_31 = arith.constant dense<0.000000e+00> : vector<8x8xf32>
    %98 = tpu.matmul %96, %97, %cst_31 {dimension_numbers = #tpu.dot_dimension_numbers<[1], [0], [0], [1], [0, 0, 1, 1], [], []>} : vector<8x8xbf16>, vector<8x8xbf16>, vector<8x8xf32> -> vector<8x8xf32>
    %99 = tpu.reciprocal %95 {approx = true} : vector<8x1xf32> -> vector<8x1xf32>
    %100 = vector.broadcast %99 : vector<8x1xf32> to vector<8x8xf32>
    %101 = arith.mulf %98, %100 : vector<8x8xf32>
    %102 = vector.extract_strided_slice %29 {offsets = [0, 24], sizes = [8, 8], strides = [1, 1]} : vector<8x96xf32> to vector<8x8xf32>
    %cst_32 = arith.constant 0.353553385 : f32
    %103 = vector.broadcast %cst_32 : f32 to vector<8x8xf32>
    %104 = arith.mulf %102, %103 : vector<8x8xf32>
    %105 = vector.extract_strided_slice %29 {offsets = [0, 56], sizes = [8, 8], strides = [1, 1]} : vector<8x96xf32> to vector<8x8xf32>
    %106 = vector.extract_strided_slice %29 {offsets = [0, 88], sizes = [8, 8], strides = [1, 1]} : vector<8x96xf32> to vector<8x8xf32>
    %107 = arith.truncf %104 : vector<8x8xf32> to vector<8x8xbf16>
    %108 = arith.truncf %105 : vector<8x8xf32> to vector<8x8xbf16>
    %cst_33 = arith.constant dense<0.000000e+00> : vector<8x8xf32>
    %109 = tpu.matmul %107, %108, %cst_33 {dimension_numbers = #tpu.dot_dimension_numbers<[1], [1], [0], [0], [0, 0, 1, 0], [], []>} : vector<8x8xbf16>, vector<8x8xbf16>, vector<8x8xf32> -> vector<8x8xf32>
    %cst_34 = arith.constant -3.40282347E+38 : f32
    %110 = vector.broadcast %cst_34 : f32 to vector<8x8xf32>
    %111 = arith.select %32, %109, %110 : vector<8x8xi1>, vector<8x8xf32>
    %cst_35 = arith.constant dense<0xFF800000> : vector<8xf32>
    %112 = vector.multi_reduction <maximumf>, %111, %cst_35 [1] : vector<8x8xf32> to vector<8xf32>
    %113 = vector.shape_cast %112 : vector<8xf32> to vector<8x1xf32>
    %114 = vector.broadcast %113 : vector<8x1xf32> to vector<8x8xf32>
    %115 = arith.subf %111, %114 : vector<8x8xf32>
    %116 = math.exp %115 : vector<8x8xf32>
    %cst_36 = arith.constant dense<0.000000e+00> : vector<8xf32>
    %117 = vector.multi_reduction <add>, %116, %cst_36 [1] : vector<8x8xf32> to vector<8xf32>
    %118 = vector.shape_cast %117 : vector<8xf32> to vector<8x1xf32>
    %119 = arith.truncf %116 : vector<8x8xf32> to vector<8x8xbf16>
    %120 = arith.truncf %106 : vector<8x8xf32> to vector<8x8xbf16>
    %cst_37 = arith.constant dense<0.000000e+00> : vector<8x8xf32>
    %121 = tpu.matmul %119, %120, %cst_37 {dimension_numbers = #tpu.dot_dimension_numbers<[1], [0], [0], [1], [0, 0, 1, 1], [], []>} : vector<8x8xbf16>, vector<8x8xbf16>, vector<8x8xf32> -> vector<8x8xf32>
    %122 = tpu.reciprocal %118 {approx = true} : vector<8x1xf32> -> vector<8x1xf32>
    %123 = vector.broadcast %122 : vector<8x1xf32> to vector<8x8xf32>
    %124 = arith.mulf %121, %123 : vector<8x8xf32>
    %125 = tpu.concatenate %55, %78, %101, %124 in 1 : vector<8x8xf32>, vector<8x8xf32>, vector<8x8xf32>, vector<8x8xf32> -> vector<8x32xf32>
    %c0_38 = arith.constant 0 : index
    %c0_39 = arith.constant 0 : index
    %126 = vector.load %arg5[%c0_38, %c0_39] : memref<32x32xf32, #tpu.memory_space<vmem>>, vector<32x32xf32>
    %127 = arith.truncf %125 : vector<8x32xf32> to vector<8x32xbf16>
    %128 = arith.truncf %126 : vector<32x32xf32> to vector<32x32xbf16>
    %cst_40 = arith.constant dense<0.000000e+00> : vector<8x32xf32>
    %129 = tpu.matmul %127, %128, %cst_40 {dimension_numbers = #tpu.dot_dimension_numbers<[1], [0], [0], [1], [0, 0, 1, 1], [], []>} : vector<8x32xbf16>, vector<32x32xbf16>, vector<8x32xf32> -> vector<8x32xf32>
    %c0_41 = arith.constant 0 : index
    %c0_42 = arith.constant 0 : index
    %130 = vector.load %arg6[%c0_41, %c0_42] : memref<1x32xf32, #tpu.memory_space<vmem>>, vector<1x32xf32>
    %131 = vector.broadcast %130 : vector<1x32xf32> to vector<8x32xf32>
    %132 = arith.addf %129, %131 : vector<8x32xf32>
    %133 = arith.addf %132, %0 : vector<8x32xf32>
    %c0_43 = arith.constant 0 : index
    %c0_44 = arith.constant 0 : index
    %134 = vector.load %arg14[%c0_43, %c0_44] : memref<8x32xf32, #tpu.memory_space<vmem>>, vector<8x32xf32>
    tpu.vector_store %arg14[%c0_43, %c0_44], %133 {strides = array<i32>} : memref<8x32xf32, #tpu.memory_space<vmem>>, vector<8x32xf32>,
    %c0_45 = arith.constant 0 : index
    %c0_46 = arith.constant 0 : index
    %135 = vector.load %arg7[%c0_45, %c0_46] : memref<1x32xf32, #tpu.memory_space<vmem>>, vector<1x32xf32>
    %c0_47 = arith.constant 0 : index
    %c0_48 = arith.constant 0 : index
    %136 = vector.load %arg8[%c0_47, %c0_48] : memref<1x32xf32, #tpu.memory_space<vmem>>, vector<1x32xf32>
    %cst_49 = arith.constant dense<0.000000e+00> : vector<8xf32>
    %137 = vector.multi_reduction <add>, %133, %cst_49 [1] : vector<8x32xf32> to vector<8xf32>
    %138 = vector.shape_cast %137 : vector<8xf32> to vector<8x1xf32>
    %cst_50 = arith.constant 3.200000e+01 : f32
    %139 = vector.broadcast %cst_50 : f32 to vector<8x1xf32>
    %140 = arith.divf %138, %139 : vector<8x1xf32>
    %141 = vector.broadcast %140 : vector<8x1xf32> to vector<8x32xf32>
    %142 = arith.subf %133, %141 : vector<8x32xf32>
    %143 = arith.mulf %142, %142 : vector<8x32xf32>
    %cst_51 = arith.constant dense<0.000000e+00> : vector<8xf32>
    %144 = vector.multi_reduction <add>, %143, %cst_51 [1] : vector<8x32xf32> to vector<8xf32>
    %145 = vector.shape_cast %144 : vector<8xf32> to vector<8x1xf32>
    %cst_52 = arith.constant 3.200000e+01 : f32
    %146 = vector.broadcast %cst_52 : f32 to vector<8x1xf32>
    %147 = arith.divf %145, %146 : vector<8x1xf32>
    %cst_53 = arith.constant 9.99999974E-6 : f32
    %148 = vector.broadcast %cst_53 : f32 to vector<8x1xf32>
    %149 = arith.addf %147, %148 : vector<8x1xf32>
    %150 = math.rsqrt %149 : vector<8x1xf32>
    %151 = vector.broadcast %150 : vector<8x1xf32> to vector<8x32xf32>
    %152 = arith.mulf %142, %151 : vector<8x32xf32>
    %153 = vector.broadcast %135 : vector<1x32xf32> to vector<8x32xf32>
    %154 = arith.mulf %152, %153 : vector<8x32xf32>
    %155 = vector.broadcast %136 : vector<1x32xf32> to vector<8x32xf32>
    %156 = arith.addf %154, %155 : vector<8x32xf32>
    %c0_54 = arith.constant 0 : index
    %c0_55 = arith.constant 0 : index
    %157 = vector.load %arg9[%c0_54, %c0_55] : memref<32x128xf32, #tpu.memory_space<vmem>>, vector<32x128xf32>
    %158 = arith.truncf %156 : vector<8x32xf32> to vector<8x32xbf16>
    %159 = arith.truncf %157 : vector<32x128xf32> to vector<32x128xbf16>
    %cst_56 = arith.constant dense<0.000000e+00> : vector<8x128xf32>
    %160 = tpu.matmul %158, %159, %cst_56 {dimension_numbers = #tpu.dot_dimension_numbers<[1], [0], [0], [1], [0, 0, 1, 1], [], []>} : vector<8x32xbf16>, vector<32x128xbf16>, vector<8x128xf32> -> vector<8x128xf32>
    %c0_57 = arith.constant 0 : index
    %c0_58 = arith.constant 0 : index
    %161 = vector.load %arg10[%c0_57, %c0_58] : memref<1x128xf32, #tpu.memory_space<vmem>>, vector<1x128xf32>
    %162 = vector.broadcast %161 : vector<1x128xf32> to vector<8x128xf32>
    %163 = arith.addf %160, %162 : vector<8x128xf32>
    %cst_59 = arith.constant 0.000000e+00 : f32
    %164 = vector.broadcast %cst_59 : f32 to vector<8x128xf32>
    %165 = arith.maximumf %163, %164 : vector<8x128xf32>
    %c0_60 = arith.constant 0 : index
    %c0_61 = arith.constant 0 : index
    %166 = vector.load %arg11[%c0_60, %c0_61] : memref<128x32xf32, #tpu.memory_space<vmem>>, vector<128x32xf32>
    %167 = arith.truncf %165 : vector<8x128xf32> to vector<8x128xbf16>
    %168 = arith.truncf %166 : vector<128x32xf32> to vector<128x32xbf16>
    %cst_62 = arith.constant dense<0.000000e+00> : vector<8x32xf32>
    %169 = tpu.matmul %167, %168, %cst_62 {dimension_numbers = #tpu.dot_dimension_numbers<[1], [0], [0], [1], [0, 0, 1, 1], [], []>} : vector<8x128xbf16>, vector<128x32xbf16>, vector<8x32xf32> -> vector<8x32xf32>
    %c0_63 = arith.constant 0 : index
    %c0_64 = arith.constant 0 : index
    %170 = vector.load %arg12[%c0_63, %c0_64] : memref<1x32xf32, #tpu.memory_space<vmem>>, vector<1x32xf32>
    %171 = vector.broadcast %170 : vector<1x32xf32> to vector<8x32xf32>
    %172 = arith.addf %169, %171 : vector<8x32xf32>
    %173 = arith.addf %172, %133 : vector<8x32xf32>
    %c0_65 = arith.constant 0 : index
    %c0_66 = arith.constant 0 : index
    %174 = vector.load %arg13[%c0_65, %c0_66] : memref<8x32xf32, #tpu.memory_space<vmem>>, vector<8x32xf32>
    tpu.vector_store %arg13[%c0_65, %c0_66], %173 {strides = array<i32>} : memref<8x32xf32, #tpu.memory_space<vmem>>, vector<8x32xf32>,
    return
  }
}

</mosaic_0001>

<llo_original>
// kernel: tpu_custom_call.1
$region0: #{tpu_custom_call.1}
  #allocation0 [shape = 'u32[]', space=smem, size = 0x4, offset = 0x4, fixed_abs, tag = 'smem constant byte address 0x4 - core index']
  #allocation1 [shape = 'u32[144,128]{1,0:T(1,128)}', space=vmem, size = 0x12000, scoped, tag = 'internal scratch']
  %s0 = inlined_call_operand.vmem [shape: f32[8,32], index: 0, kind: input, shape index: {}]
  %s1 = inlined_call_operand.vmem [shape: f32[1,32], index: 1, kind: input, shape index: {}]
  %s2 = inlined_call_operand.vmem [shape: f32[1,32], index: 2, kind: input, shape index: {}]
  %s3 = inlined_call_operand.vmem [shape: f32[32,96], index: 3, kind: input, shape index: {}]
  %s4 = inlined_call_operand.vmem [shape: f32[1,96], index: 4, kind: input, shape index: {}]
  %s5 = inlined_call_operand.vmem [shape: f32[32,32], index: 5, kind: input, shape index: {}]
  %s6 = inlined_call_operand.vmem [shape: f32[1,32], index: 6, kind: input, shape index: {}]
  %s7 = inlined_call_operand.vmem [shape: f32[1,32], index: 7, kind: input, shape index: {}]
  %s8 = inlined_call_operand.vmem [shape: f32[1,32], index: 8, kind: input, shape index: {}]
  %s9 = inlined_call_operand.vmem [shape: f32[32,128], index: 9, kind: input, shape index: {}]
  %s10 = inlined_call_operand.vmem [shape: f32[1,128], index: 10, kind: input, shape index: {}]
  %s11 = inlined_call_operand.vmem [shape: f32[128,32], index: 11, kind: input, shape index: {}]
  %s12 = inlined_call_operand.vmem [shape: f32[1,32], index: 12, kind: input, shape index: {}]
  %s13 = inlined_call_operand.hbm [shape: f32[8,32], index: 13, kind: output, shape index: {0}]
  %s14 = inlined_call_operand.hbm [shape: f32[8,32], index: 14, kind: output, shape index: {1}]
  %15 = xla_tuple %s13, %s14
  %s16 = sld [smem:[#allocation0]]
  $region70: #{tpu_custom_call.1} parent=0
    _
  %s18 = ssub.s32 1, %s16
  %s19 = scalar_select 0, %s18, %s16
  $region1: #{tpu_custom_call.1} parent=0
    #allocation2 [shape = 'u8[4096]{0}', space=vmem, size = 0x1000, scoped, tag = 'output window, operand 0, single buffered']
    #allocation3 [shape = 's32[1]{0}', space=sflag, size = 0x4, scoped, tag = 'scoped memory for tpu_custom_call.1']
    #allocation4 [shape = 'u8[4096]{0}', space=vmem, size = 0x1000, scoped, tag = 'output window, operand 1, single buffered']
    #allocation5 [shape = 's32[1]{0}', space=sflag, size = 0x4, scoped, tag = 'scoped memory for tpu_custom_call.1']
    %20 = vsyncpa [#allocation3], 0
    %21 = vsyncpa [#allocation5], 0
    // Predicated region
    $region2: #{tpu_custom_call.1} parent=1 // pred_check
      _
    $region3: #{tpu_custom_call.1} parent=1 // pred_check_branch
      %23 = sbr.rel (0) target = $region5
    $region4: #{tpu_custom_call.1} parent=1 // pred_region
      _
    $region5: #{tpu_custom_call.1} parent=1 // pred_fallthru
      _
    // Predicated region
    $region6: #{tpu_custom_call.1} parent=1 // pred_check
      _
    $region7: #{tpu_custom_call.1} parent=1 // pred_check_branch
      %25 = sbr.rel (0) target = $region9
    $region8: #{tpu_custom_call.1} parent=1 // pred_region
      _
    $region9: #{tpu_custom_call.1} parent=1 // pred_fallthru
      _
    // Predicated region
    $region10: #{tpu_custom_call.1} parent=1 // pred_check
      _
    $region11: #{tpu_custom_call.1} parent=1 // pred_check_branch
      %27 = sbr.rel (0) target = $region13
    $region12: #{tpu_custom_call.1} parent=1 // pred_region
      _
    $region13: #{tpu_custom_call.1} parent=1 // pred_fallthru
      _
    // Predicated region
    $region14: #{tpu_custom_call.1} parent=1 // pred_check
      _
    $region15: #{tpu_custom_call.1} parent=1 // pred_check_branch
      %29 = sbr.rel (0) target = $region17
    $region16: #{tpu_custom_call.1} parent=1 // pred_region
      _
    $region17: #{tpu_custom_call.1} parent=1 // pred_fallthru
      _
    // Predicated region
    $region18: #{tpu_custom_call.1} parent=1 // pred_check
      _
    $region19: #{tpu_custom_call.1} parent=1 // pred_check_branch
      %31 = sbr.rel (0) target = $region21
    $region20: #{tpu_custom_call.1} parent=1 // pred_region
      _
    $region21: #{tpu_custom_call.1} parent=1 // pred_fallthru
      _
    // Predicated region
    $region22: #{tpu_custom_call.1} parent=1 // pred_check
      _
    $region23: #{tpu_custom_call.1} parent=1 // pred_check_branch
      %33 = sbr.rel (0) target = $region25
    $region24: #{tpu_custom_call.1} parent=1 // pred_region
      _
    $region25: #{tpu_custom_call.1} parent=1 // pred_fallthru
      _
    // Predicated region
    $region26: #{tpu_custom_call.1} parent=1 // pred_check
      _
    $region27: #{tpu_custom_call.1} parent=1 // pred_check_branch
      %35 = sbr.rel (0) target = $region29
    $region28: #{tpu_custom_call.1} parent=1 // pred_region
      _
    $region29: #{tpu_custom_call.1} parent=1 // pred_fallthru
      _
    // Predicated region
    $region30: #{tpu_custom_call.1} parent=1 // pred_check
      _
    $region31: #{tpu_custom_call.1} parent=1 // pred_check_branch
      %37 = sbr.rel (0) target = $region33
    $region32: #{tpu_custom_call.1} parent=1 // pred_region
      _
    $region33: #{tpu_custom_call.1} parent=1 // pred_fallthru
      _
    // Predicated region
    $region34: #{tpu_custom_call.1} parent=1 // pred_check
      _
    $region35: #{tpu_custom_call.1} parent=1 // pred_check_branch
      %39 = sbr.rel (0) target = $region37
    $region36: #{tpu_custom_call.1} parent=1 // pred_region
      _
    $region37: #{tpu_custom_call.1} parent=1 // pred_fallthru
      _
    // Predicated region
    $region38: #{tpu_custom_call.1} parent=1 // pred_check
      _
    $region39: #{tpu_custom_call.1} parent=1 // pred_check_branch
      %41 = sbr.rel (0) target = $region41
    $region40: #{tpu_custom_call.1} parent=1 // pred_region
      _
    $region41: #{tpu_custom_call.1} parent=1 // pred_fallthru
      _
    // Predicated region
    $region42: #{tpu_custom_call.1} parent=1 // pred_check
      _
    $region43: #{tpu_custom_call.1} parent=1 // pred_check_branch
      %43 = sbr.rel (0) target = $region45
    $region44: #{tpu_custom_call.1} parent=1 // pred_region
      _
    $region45: #{tpu_custom_call.1} parent=1 // pred_fallthru
      _
    // Predicated region
    $region46: #{tpu_custom_call.1} parent=1 // pred_check
      _
    $region47: #{tpu_custom_call.1} parent=1 // pred_check_branch
      %45 = sbr.rel (0) target = $region49
    $region48: #{tpu_custom_call.1} parent=1 // pred_region
      _
    $region49: #{tpu_custom_call.1} parent=1 // pred_fallthru
      _
    // Predicated region
    $region50: #{tpu_custom_call.1} parent=1 // pred_check
      _
    $region51: #{tpu_custom_call.1} parent=1 // pred_check_branch
      %47 = sbr.rel (0) target = $region53
    $region52: #{tpu_custom_call.1} parent=1 // pred_region
      _
    $region53: #{tpu_custom_call.1} parent=1 // pred_fallthru
      _
    %v49 = vld [vmem:[%s0] sm:$0xff]
    %v50 = vld [vmem:[%s1] sm:$0x1]
    %v51 = vld [vmem:[%s2] sm:$0x1]
    %vm52 = vcmask 261120
    %v53 = vsel %vm52, %v49, 0.0
    %54 = vadd.xlane.f32.xlu0 %v53
    %v55 = vpop.xlane.xlu0 %54
    %v56 = vrcp.pop 32.0
    %v57 = vmul.f32 %v55, %v56
    %v58 = vsub.f32 %v49, %v57
    %v59 = vmul.f32 %v58, %v58
    %v60 = vsel %vm52, %v59, 0.0
    %61 = vadd.xlane.f32.xlu0 %v60
    %v62 = vpop.xlane.xlu0 %61
    %v63 = vmul.f32 %v62, %v56
    %v64 = vadd.f32 %v63, 1e-05
    %v65 = vrsqrt.pop %v64
    %v66 = vmul.f32 %v58, %v65
    %v68 = vlaneseq
    %v69 = vshrl.u32 %v68, 7
    %v70 = vsub.s32 0, %v69
    %v71 = vrot.slane %v50, %v70
    %v73 = vmul.f32 %v66, %v71
    %v75 = vlaneseq
    %v76 = vshrl.u32 %v75, 7
    %v77 = vsub.s32 0, %v76
    %v78 = vrot.slane %v51, %v77
    %v80 = vadd.f32 %v73, %v78
    %v81 = vld [vmem:[%s3] sm:$0xff]
    %v82 = vld [vmem:[%s3 + $0x8] sm:$0xff]
    %v83 = vld [vmem:[%s3 + $0x10] sm:$0xff]
    %v84 = vld [vmem:[%s3 + $0x18] sm:$0xff]
    %v85 = vpack.c.bf16 %v80, %v80
    %v86 = vpack.c.bf16 %v82, %v81
    %v87 = vpack.c.bf16 %v84, %v83
    %v88 = vld [vmem:[%s4] sm:$0x1]
    %v90 = vlaneseq
    %v91 = vshrl.u32 %v90, 7
    %v92 = vsub.s32 0, %v91
    %v93 = vrot.slane %v88, %v92
    %v96 = vsel %vm52, %v85, 0
    %98 = vmatprep.subr.bf16.mxu0 0
    %99 = vmatpush1.bf16.msra.mxu0 %v86
    %100 = vmatprep.subr.bf16.mxu0 0
    %101 = vmatpush1.bf16.msra.mxu0 %v87
    %102 = vmatprep.subr.bf16.mxu0 0
    %103 = vmatpush1.bf16.msra.mxu0 0
    %104 = vmatprep.subr.bf16.mxu0 0
    %105 = vmatpush1.bf16.msra.mxu0 0
    %106 = vmatprep.subr.bf16.mxu0 0
    %107 = vmatpush1.bf16.msra.mxu0 0
    %108 = vmatprep.subr.bf16.mxu0 0
    %109 = vmatpush1.bf16.msra.mxu0 0
    %110 = vmatprep.subr.bf16.mxu0 0
    %111 = vmatpush1.bf16.msra.mxu0 0
    %112 = vmatprep.subr.bf16.mxu0 0
    %113 = vmatpush1.bf16.msra.mxu0 0
    %114 = vmatprep.subr.bf16.mxu0 0
    %115 = vmatpush1.bf16.msra.mxu0 0
    %116 = vmatprep.subr.bf16.mxu0 0
    %117 = vmatpush1.bf16.msra.mxu0 0
    %118 = vmatprep.subr.bf16.mxu0 0
    %119 = vmatpush1.bf16.msra.mxu0 0
    %120 = vmatprep.subr.bf16.mxu0 0
    %121 = vmatpush1.bf16.msra.mxu0 0
    %122 = vmatprep.subr.bf16.mxu0 0
    %123 = vmatpush1.bf16.msra.mxu0 0
    %124 = vmatprep.subr.bf16.mxu0 0
    %125 = vmatpush1.bf16.msra.mxu0 0
    %126 = vmatprep.subr.bf16.mxu0 0
    %127 = vmatpush1.bf16.msra.mxu0 0
    %128 = vmatprep.subr.bf16.mxu0 0
    %129 = vmatpush1.bf16.msra.mxu0 0
    %130 = vmatprep.mubr.bf16.mxu0 0
    %131 = vmatmul.mubr.bf16.gmra.mrb[0].mxu0 %v96
    %v132 = vpop.f32.mrb[0].mxu0
    %v133 = vadd.f32 %v93, %v132
    %v134 = vpop.f32.mrb[0].mxu0
    %v135 = vpop.f32.mrb[0].mxu0
    %v136 = vpop.f32.mrb[0].mxu0
    %137 = vdwg.mxu0
    %v138 = vlaneseq
    %v139 = vshrl.u32 %v138, 7
    %v140 = vlaneseq
    %v141 = vand.u32 %v140, 127
    %vm142 = vcmp.le.s32.totalorder %v141, %v139
    %v143 = vmul.f32 %v133, 0.35355338
    %v144 = vpack.c.bf16 %v143, %v143
    %v145 = vpack.c.bf16 %v133, %v133
    %147 = vrot.lane.b32.xlu0 %v145, 96
    %v148 = vpop.permute.xlu0 %147
    %vm149 = vcmask 64512
    %v151 = vsel %vm149, %v144, 0
    %v154 = vsel %vm149, %v148, 0
    %156 = vmatprep.subr.bf16.mxu0 0
    %157 = vmatpush1.bf16.xpose.msra.mxu0 %v154
    %158 = vmatprep.subr.bf16.mxu0 0
    %159 = vmatpush1.bf16.xpose.msra.mxu0 0
    %160 = vmatprep.subr.bf16.mxu0 0
    %161 = vmatpush1.bf16.xpose.msra.mxu0 0
    %162 = vmatprep.subr.bf16.mxu0 0
    %163 = vmatpush1.bf16.xpose.msra.mxu0 0
    %164 = vmatprep.subr.bf16.mxu0 0
    %165 = vmatpush1.bf16.xpose.msra.mxu0 0
    %166 = vmatprep.subr.bf16.mxu0 0
    %167 = vmatpush1.bf16.xpose.msra.mxu0 0
    %168 = vmatprep.subr.bf16.mxu0 0
    %169 = vmatpush1.bf16.xpose.msra.mxu0 0
    %170 = vmatprep.subr.bf16.mxu0 0
    %171 = vmatpush1.bf16.xpose.msra.mxu0 0
    %172 = vmatprep.subr.bf16.mxu0 0
    %173 = vmatpush1.bf16.xpose.msra.mxu0 0
    %174 = vmatprep.subr.bf16.mxu0 0
    %175 = vmatpush1.bf16.xpose.msra.mxu0 0
    %176 = vmatprep.subr.bf16.mxu0 0
    %177 = vmatpush1.bf16.xpose.msra.mxu0 0
    %178 = vmatprep.subr.bf16.mxu0 0
    %179 = vmatpush1.bf16.xpose.msra.mxu0 0
    %180 = vmatprep.subr.bf16.mxu0 0
    %181 = vmatpush1.bf16.xpose.msra.mxu0 0
    %182 = vmatprep.subr.bf16.mxu0 0
    %183 = vmatpush1.bf16.xpose.msra.mxu0 0
    %184 = vmatprep.subr.bf16.mxu0 0
    %185 = vmatpush1.bf16.xpose.msra.mxu0 0
    %186 = vmatprep.subr.bf16.mxu0 0
    %187 = vmatpush1.bf16.xpose.msra.mxu0 0
    %188 = vmatprep.mubr.bf16.mxu0 0
    %189 = vmatmul.mubr.bf16.gmra.mrb[0].mxu0 %v151
    %v190 = vpop.f32.mrb[0].mxu0
    %v191 = vadd.f32 0.0, %v190
    %v192 = vpop.f32.mrb[0].mxu0
    %v193 = vpop.f32.mrb[0].mxu0
    %v194 = vpop.f32.mrb[0].mxu0
    %195 = vdwg.mxu0
    %v196 = vsel %vm142, %v191, -3.4028235e+38
    %v197 = vsel %vm149, %v196, -inf
    %198 = vmax.xlane.f32.xlu0 %v197
    %v199 = vpop.xlane.xlu0 %198
    %v200 = vsub.f32 %v196, %v199
    %v201 = vmul.f32 %v200, 1.442695
    %v202 = vpow.pop %v201
    %v203 = vsel %vm149, %v202, 0.0
    %204 = vadd.xlane.f32.xlu0 %v203
    %v205 = vpop.xlane.xlu0 %204
    %v206 = vpack.c.bf16 %v202, %v202
    %207 = vrot.lane.b32.xlu0 %v145, 64
    %v208 = vpop.permute.xlu0 %207
    %v210 = vsel %vm149, %v206, 0
    %vm212 = vcmask 1043456
    %v214 = vsel %vm212, %v208, 0
    %216 = vmatprep.subr.bf16.mxu0 0
    %217 = vmatpush1.bf16.msra.mxu0 %v214
    %218 = vmatprep.subr.bf16.mxu0 0
    %219 = vmatpush1.bf16.msra.mxu0 0
    %220 = vmatprep.subr.bf16.mxu0 0
    %221 = vmatpush1.bf16.msra.mxu0 0
    %222 = vmatprep.subr.bf16.mxu0 0
    %223 = vmatpush1.bf16.msra.mxu0 0
    %224 = vmatprep.subr.bf16.mxu0 0
    %225 = vmatpush1.bf16.msra.mxu0 0
    %226 = vmatprep.subr.bf16.mxu0 0
    %227 = vmatpush1.bf16.msra.mxu0 0
    %228 = vmatprep.subr.bf16.mxu0 0
    %229 = vmatpush1.bf16.msra.mxu0 0
    %230 = vmatprep.subr.bf16.mxu0 0
    %231 = vmatpush1.bf16.msra.mxu0 0
    %232 = vmatprep.subr.bf16.mxu0 0
    %233 = vmatpush1.bf16.msra.mxu0 0
    %234 = vmatprep.subr.bf16.mxu0 0
    %235 = vmatpush1.bf16.msra.mxu0 0
    %236 = vmatprep.subr.bf16.mxu0 0
    %237 = vmatpush1.bf16.msra.mxu0 0
    %238 = vmatprep.subr.bf16.mxu0 0
    %239 = vmatpush1.bf16.msra.mxu0 0
    %240 = vmatprep.subr.bf16.mxu0 0
    %241 = vmatpush1.bf16.msra.mxu0 0
    %242 = vmatprep.subr.bf16.mxu0 0
    %243 = vmatpush1.bf16.msra.mxu0 0
    %244 = vmatprep.subr.bf16.mxu0 0
    %245 = vmatpush1.bf16.msra.mxu0 0
    %246 = vmatprep.subr.bf16.mxu0 0
    %247 = vmatpush1.bf16.msra.mxu0 0
    %248 = vmatprep.mubr.bf16.mxu0 0
    %249 = vmatmul.mubr.bf16.gmra.mrb[0].mxu0 %v210
    %v250 = vpop.f32.mrb[0].mxu0
    %v251 = vadd.f32 0.0, %v250
    %v252 = vpop.f32.mrb[0].mxu0
    %v253 = vpop.f32.mrb[0].mxu0
    %v254 = vpop.f32.mrb[0].mxu0
    %255 = vdwg.mxu0
    %v256 = vrcp.pop %v205
    %v257 = vmul.f32 %v251, %v256
    %259 = vrot.lane.b32.xlu0 %v144, 120
    %v260 = vpop.permute.xlu0 %259
    %261 = vrot.lane.b32.xlu0 %v145, 88
    %v262 = vpop.permute.xlu0 %261
    %v264 = vsel %vm149, %v260, 0
    %v267 = vsel %vm149, %v262, 0
    %269 = vmatprep.subr.bf16.mxu0 0
    %270 = vmatpush1.bf16.xpose.msra.mxu0 %v267
    %271 = vmatprep.subr.bf16.mxu0 0
    %272 = vmatpush1.bf16.xpose.msra.mxu0 0
    %273 = vmatprep.subr.bf16.mxu0 0
    %274 = vmatpush1.bf16.xpose.msra.mxu0 0
    %275 = vmatprep.subr.bf16.mxu0 0
    %276 = vmatpush1.bf16.xpose.msra.mxu0 0
    %277 = vmatprep.subr.bf16.mxu0 0
    %278 = vmatpush1.bf16.xpose.msra.mxu0 0
    %279 = vmatprep.subr.bf16.mxu0 0
    %280 = vmatpush1.bf16.xpose.msra.mxu0 0
    %281 = vmatprep.subr.bf16.mxu0 0
    %282 = vmatpush1.bf16.xpose.msra.mxu0 0
    %283 = vmatprep.subr.bf16.mxu0 0
    %284 = vmatpush1.bf16.xpose.msra.mxu0 0
    %285 = vmatprep.subr.bf16.mxu0 0
    %286 = vmatpush1.bf16.xpose.msra.mxu0 0
    %287 = vmatprep.subr.bf16.mxu0 0
    %288 = vmatpush1.bf16.xpose.msra.mxu0 0
    %289 = vmatprep.subr.bf16.mxu0 0
    %290 = vmatpush1.bf16.xpose.msra.mxu0 0
    %291 = vmatprep.subr.bf16.mxu0 0
    %292 = vmatpush1.bf16.xpose.msra.mxu0 0
    %293 = vmatprep.subr.bf16.mxu0 0
    %294 = vmatpush1.bf16.xpose.msra.mxu0 0
    %295 = vmatprep.subr.bf16.mxu0 0
    %296 = vmatpush1.bf16.xpose.msra.mxu0 0
    %297 = vmatprep.subr.bf16.mxu0 0
    %298 = vmatpush1.bf16.xpose.msra.mxu0 0
    %299 = vmatprep.subr.bf16.mxu0 0
    %300 = vmatpush1.bf16.xpose.msra.mxu0 0
    %301 = vmatprep.mubr.bf16.mxu0 0
    %302 = vmatmul.mubr.bf16.gmra.mrb[0].mxu0 %v264
    %v303 = vpop.f32.mrb[0].mxu0
    %v304 = vadd.f32 0.0, %v303
    %v305 = vpop.f32.mrb[0].mxu0
    %v306 = vpop.f32.mrb[0].mxu0
    %v307 = vpop.f32.mrb[0].mxu0
    %308 = vdwg.mxu0
    %v309 = vsel %vm142, %v304, -3.4028235e+38
    %v310 = vsel %vm149, %v309, -inf
    %311 = vmax.xlane.f32.xlu0 %v310
    %v312 = vpop.xlane.xlu0 %311
    %v313 = vsub.f32 %v309, %v312
    %v314 = vmul.f32 %v313, 1.442695
    %v315 = vpow.pop %v314
    %v316 = vsel %vm149, %v315, 0.0
    %317 = vadd.xlane.f32.xlu0 %v316
    %v318 = vpop.xlane.xlu0 %317
    %v319 = vpack.c.bf16 %v315, %v315
    %320 = vrot.lane.b32.xlu0 %v145, 56
    %v321 = vpop.permute.xlu0 %320
    %v323 = vsel %vm149, %v319, 0
    %v326 = vsel %vm212, %v321, 0
    %328 = vmatprep.subr.bf16.mxu0 0
    %329 = vmatpush1.bf16.msra.mxu0 %v326
    %330 = vmatprep.subr.bf16.mxu0 0
    %331 = vmatpush1.bf16.msra.mxu0 0
    %332 = vmatprep.subr.bf16.mxu0 0
    %333 = vmatpush1.bf16.msra.mxu0 0
    %334 = vmatprep.subr.bf16.mxu0 0
    %335 = vmatpush1.bf16.msra.mxu0 0
    %336 = vmatprep.subr.bf16.mxu0 0
    %337 = vmatpush1.bf16.msra.mxu0 0
    %338 = vmatprep.subr.bf16.mxu0 0
    %339 = vmatpush1.bf16.msra.mxu0 0
    %340 = vmatprep.subr.bf16.mxu0 0
    %341 = vmatpush1.bf16.msra.mxu0 0
    %342 = vmatprep.subr.bf16.mxu0 0
    %343 = vmatpush1.bf16.msra.mxu0 0
    %344 = vmatprep.subr.bf16.mxu0 0
    %345 = vmatpush1.bf16.msra.mxu0 0
    %346 = vmatprep.subr.bf16.mxu0 0
    %347 = vmatpush1.bf16.msra.mxu0 0
    %348 = vmatprep.subr.bf16.mxu0 0
    %349 = vmatpush1.bf16.msra.mxu0 0
    %350 = vmatprep.subr.bf16.mxu0 0
    %351 = vmatpush1.bf16.msra.mxu0 0
    %352 = vmatprep.subr.bf16.mxu0 0
    %353 = vmatpush1.bf16.msra.mxu0 0
    %354 = vmatprep.subr.bf16.mxu0 0
    %355 = vmatpush1.bf16.msra.mxu0 0
    %356 = vmatprep.subr.bf16.mxu0 0
    %357 = vmatpush1.bf16.msra.mxu0 0
    %358 = vmatprep.subr.bf16.mxu0 0
    %359 = vmatpush1.bf16.msra.mxu0 0
    %360 = vmatprep.mubr.bf16.mxu0 0
    %361 = vmatmul.mubr.bf16.gmra.mrb[0].mxu0 %v323
    %v362 = vpop.f32.mrb[0].mxu0
    %v363 = vadd.f32 0.0, %v362
    %v364 = vpop.f32.mrb[0].mxu0
    %v365 = vpop.f32.mrb[0].mxu0
    %v366 = vpop.f32.mrb[0].mxu0
    %367 = vdwg.mxu0
    %v368 = vrcp.pop %v318
    %v369 = vmul.f32 %v363, %v368
    %370 = vrot.lane.b32.xlu0 %v144, 112
    %v371 = vpop.permute.xlu0 %370
    %372 = vrot.lane.b32.xlu0 %v145, 80
    %v373 = vpop.permute.xlu0 %372
    %v375 = vsel %vm149, %v371, 0
    %v378 = vsel %vm149, %v373, 0
    %380 = vmatprep.subr.bf16.mxu0 0
    %381 = vmatpush1.bf16.xpose.msra.mxu0 %v378
    %382 = vmatprep.subr.bf16.mxu0 0
    %383 = vmatpush1.bf16.xpose.msra.mxu0 0
    %384 = vmatprep.subr.bf16.mxu0 0
    %385 = vmatpush1.bf16.xpose.msra.mxu0 0
    %386 = vmatprep.subr.bf16.mxu0 0
    %387 = vmatpush1.bf16.xpose.msra.mxu0 0
    %388 = vmatprep.subr.bf16.mxu0 0
    %389 = vmatpush1.bf16.xpose.msra.mxu0 0
    %390 = vmatprep.subr.bf16.mxu0 0
    %391 = vmatpush1.bf16.xpose.msra.mxu0 0
    %392 = vmatprep.subr.bf16.mxu0 0
    %393 = vmatpush1.bf16.xpose.msra.mxu0 0
    %394 = vmatprep.subr.bf16.mxu0 0
    %395 = vmatpush1.bf16.xpose.msra.mxu0 0
    %396 = vmatprep.subr.bf16.mxu0 0
    %397 = vmatpush1.bf16.xpose.msra.mxu0 0
    %398 = vmatprep.subr.bf16.mxu0 0
    %399 = vmatpush1.bf16.xpose.msra.mxu0 0
    %400 = vmatprep.subr.bf16.mxu0 0
    %401 = vmatpush1.bf16.xpose.msra.mxu0 0
    %402 = vmatprep.subr.bf16.mxu0 0
    %403 = vmatpush1.bf16.xpose.msra.mxu0 0
    %404 = vmatprep.subr.bf16.mxu0 0
    %405 = vmatpush1.bf16.xpose.msra.mxu0 0
    %406 = vmatprep.subr.bf16.mxu0 0
    %407 = vmatpush1.bf16.xpose.msra.mxu0 0
    %408 = vmatprep.subr.bf16.mxu0 0
    %409 = vmatpush1.bf16.xpose.msra.mxu0 0
    %410 = vmatprep.subr.bf16.mxu0 0
    %411 = vmatpush1.bf16.xpose.msra.mxu0 0
    %412 = vmatprep.mubr.bf16.mxu0 0
    %413 = vmatmul.mubr.bf16.gmra.mrb[0].mxu0 %v375
    %v414 = vpop.f32.mrb[0].mxu0
    %v415 = vadd.f32 0.0, %v414
    %v416 = vpop.f32.mrb[0].mxu0
    %v417 = vpop.f32.mrb[0].mxu0
    %v418 = vpop.f32.mrb[0].mxu0
    %419 = vdwg.mxu0
    %v420 = vsel %vm142, %v415, -3.4028235e+38
    %v421 = vsel %vm149, %v420, -inf
    %422 = vmax.xlane.f32.xlu0 %v421
    %v423 = vpop.xlane.xlu0 %422
    %v424 = vsub.f32 %v420, %v423
    %v425 = vmul.f32 %v424, 1.442695
    %v426 = vpow.pop %v425
    %v427 = vsel %vm149, %v426, 0.0
    %428 = vadd.xlane.f32.xlu0 %v427
    %v429 = vpop.xlane.xlu0 %428
    %v430 = vpack.c.bf16 %v426, %v426
    %431 = vrot.lane.b32.xlu0 %v145, 48
    %v432 = vpop.permute.xlu0 %431
    %v434 = vsel %vm149, %v430, 0
    %v437 = vsel %vm212, %v432, 0
    %439 = vmatprep.subr.bf16.mxu0 0
    %440 = vmatpush1.bf16.msra.mxu0 %v437
    %441 = vmatprep.subr.bf16.mxu0 0
    %442 = vmatpush1.bf16.msra.mxu0 0
    %443 = vmatprep.subr.bf16.mxu0 0
    %444 = vmatpush1.bf16.msra.mxu0 0
    %445 = vmatprep.subr.bf16.mxu0 0
    %446 = vmatpush1.bf16.msra.mxu0 0
    %447 = vmatprep.subr.bf16.mxu0 0
    %448 = vmatpush1.bf16.msra.mxu0 0
    %449 = vmatprep.subr.bf16.mxu0 0
    %450 = vmatpush1.bf16.msra.mxu0 0
    %451 = vmatprep.subr.bf16.mxu0 0
    %452 = vmatpush1.bf16.msra.mxu0 0
    %453 = vmatprep.subr.bf16.mxu0 0
    %454 = vmatpush1.bf16.msra.mxu0 0
    %455 = vmatprep.subr.bf16.mxu0 0
    %456 = vmatpush1.bf16.msra.mxu0 0
    %457 = vmatprep.subr.bf16.mxu0 0
    %458 = vmatpush1.bf16.msra.mxu0 0
    %459 = vmatprep.subr.bf16.mxu0 0
    %460 = vmatpush1.bf16.msra.mxu0 0
    %461 = vmatprep.subr.bf16.mxu0 0
    %462 = vmatpush1.bf16.msra.mxu0 0
    %463 = vmatprep.subr.bf16.mxu0 0
    %464 = vmatpush1.bf16.msra.mxu0 0
    %465 = vmatprep.subr.bf16.mxu0 0
    %466 = vmatpush1.bf16.msra.mxu0 0
    %467 = vmatprep.subr.bf16.mxu0 0
    %468 = vmatpush1.bf16.msra.mxu0 0
    %469 = vmatprep.subr.bf16.mxu0 0
    %470 = vmatpush1.bf16.msra.mxu0 0
    %471 = vmatprep.mubr.bf16.mxu0 0
    %472 = vmatmul.mubr.bf16.gmra.mrb[0].mxu0 %v434
    %v473 = vpop.f32.mrb[0].mxu0
    %v474 = vadd.f32 0.0, %v473
    %v475 = vpop.f32.mrb[0].mxu0
    %v476 = vpop.f32.mrb[0].mxu0
    %v477 = vpop.f32.mrb[0].mxu0
    %478 = vdwg.mxu0
    %v479 = vrcp.pop %v429
    %v480 = vmul.f32 %v474, %v479
    %481 = vrot.lane.b32.xlu0 %v144, 104
    %v482 = vpop.permute.xlu0 %481
    %483 = vrot.lane.b32.xlu0 %v145, 72
    %v484 = vpop.permute.xlu0 %483
    %v486 = vsel %vm149, %v482, 0
    %v489 = vsel %vm149, %v484, 0
    %491 = vmatprep.subr.bf16.mxu0 0
    %492 = vmatpush1.bf16.xpose.msra.mxu0 %v489
    %493 = vmatprep.subr.bf16.mxu0 0
    %494 = vmatpush1.bf16.xpose.msra.mxu0 0
    %495 = vmatprep.subr.bf16.mxu0 0
    %496 = vmatpush1.bf16.xpose.msra.mxu0 0
    %497 = vmatprep.subr.bf16.mxu0 0
    %498 = vmatpush1.bf16.xpose.msra.mxu0 0
    %499 = vmatprep.subr.bf16.mxu0 0
    %500 = vmatpush1.bf16.xpose.msra.mxu0 0
    %501 = vmatprep.subr.bf16.mxu0 0
    %502 = vmatpush1.bf16.xpose.msra.mxu0 0
    %503 = vmatprep.subr.bf16.mxu0 0
    %504 = vmatpush1.bf16.xpose.msra.mxu0 0
    %505 = vmatprep.subr.bf16.mxu0 0
    %506 = vmatpush1.bf16.xpose.msra.mxu0 0
    %507 = vmatprep.subr.bf16.mxu0 0
    %508 = vmatpush1.bf16.xpose.msra.mxu0 0
    %509 = vmatprep.subr.bf16.mxu0 0
    %510 = vmatpush1.bf16.xpose.msra.mxu0 0
    %511 = vmatprep.subr.bf16.mxu0 0
    %512 = vmatpush1.bf16.xpose.msra.mxu0 0
    %513 = vmatprep.subr.bf16.mxu0 0
    %514 = vmatpush1.bf16.xpose.msra.mxu0 0
    %515 = vmatprep.subr.bf16.mxu0 0
    %516 = vmatpush1.bf16.xpose.msra.mxu0 0
    %517 = vmatprep.subr.bf16.mxu0 0
    %518 = vmatpush1.bf16.xpose.msra.mxu0 0
    %519 = vmatprep.subr.bf16.mxu0 0
    %520 = vmatpush1.bf16.xpose.msra.mxu0 0
    %521 = vmatprep.subr.bf16.mxu0 0
    %522 = vmatpush1.bf16.xpose.msra.mxu0 0
    %523 = vmatprep.mubr.bf16.mxu0 0
    %524 = vmatmul.mubr.bf16.gmra.mrb[0].mxu0 %v486
    %v525 = vpop.f32.mrb[0].mxu0
    %v526 = vadd.f32 0.0, %v525
    %v527 = vpop.f32.mrb[0].mxu0
    %v528 = vpop.f32.mrb[0].mxu0
    %v529 = vpop.f32.mrb[0].mxu0
    %530 = vdwg.mxu0
    %v531 = vsel %vm142, %v526, -3.4028235e+38
    %v532 = vsel %vm149, %v531, -inf
    %533 = vmax.xlane.f32.xlu0 %v532
    %v534 = vpop.xlane.xlu0 %533
    %v535 = vsub.f32 %v531, %v534
    %v536 = vmul.f32 %v535, 1.442695
    %v537 = vpow.pop %v536
    %v538 = vsel %vm149, %v537, 0.0
    %539 = vadd.xlane.f32.xlu0 %v538
    %v540 = vpop.xlane.xlu0 %539
    %v541 = vpack.c.bf16 %v537, %v537
    %542 = vrot.lane.b32.xlu0 %v145, 40
    %v543 = vpop.permute.xlu0 %542
    %v545 = vsel %vm149, %v541, 0
    %v548 = vsel %vm212, %v543, 0
    %550 = vmatprep.subr.bf16.mxu0 0
    %551 = vmatpush1.bf16.msra.mxu0 %v548
    %552 = vmatprep.subr.bf16.mxu0 0
    %553 = vmatpush1.bf16.msra.mxu0 0
    %554 = vmatprep.subr.bf16.mxu0 0
    %555 = vmatpush1.bf16.msra.mxu0 0
    %556 = vmatprep.subr.bf16.mxu0 0
    %557 = vmatpush1.bf16.msra.mxu0 0
    %558 = vmatprep.subr.bf16.mxu0 0
    %559 = vmatpush1.bf16.msra.mxu0 0
    %560 = vmatprep.subr.bf16.mxu0 0
    %561 = vmatpush1.bf16.msra.mxu0 0
    %562 = vmatprep.subr.bf16.mxu0 0
    %563 = vmatpush1.bf16.msra.mxu0 0
    %564 = vmatprep.subr.bf16.mxu0 0
    %565 = vmatpush1.bf16.msra.mxu0 0
    %566 = vmatprep.subr.bf16.mxu0 0
    %567 = vmatpush1.bf16.msra.mxu0 0
    %568 = vmatprep.subr.bf16.mxu0 0
    %569 = vmatpush1.bf16.msra.mxu0 0
    %570 = vmatprep.subr.bf16.mxu0 0
    %571 = vmatpush1.bf16.msra.mxu0 0
    %572 = vmatprep.subr.bf16.mxu0 0
    %573 = vmatpush1.bf16.msra.mxu0 0
    %574 = vmatprep.subr.bf16.mxu0 0
    %575 = vmatpush1.bf16.msra.mxu0 0
    %576 = vmatprep.subr.bf16.mxu0 0
    %577 = vmatpush1.bf16.msra.mxu0 0
    %578 = vmatprep.subr.bf16.mxu0 0
    %579 = vmatpush1.bf16.msra.mxu0 0
    %580 = vmatprep.subr.bf16.mxu0 0
    %581 = vmatpush1.bf16.msra.mxu0 0
    %582 = vmatprep.mubr.bf16.mxu0 0
    %583 = vmatmul.mubr.bf16.gmra.mrb[0].mxu0 %v545
    %v584 = vpop.f32.mrb[0].mxu0
    %v585 = vadd.f32 0.0, %v584
    %v586 = vpop.f32.mrb[0].mxu0
    %v587 = vpop.f32.mrb[0].mxu0
    %v588 = vpop.f32.mrb[0].mxu0
    %589 = vdwg.mxu0
    %v590 = vrcp.pop %v540
    %v591 = vmul.f32 %v585, %v590
    %593 = vrot.lane.b32.xlu0 %v369, 8
    %v594 = vpop.permute.xlu0 %593
    %597 = vrot.lane.b32.xlu0 %v480, 16
    %v598 = vpop.permute.xlu0 %597
    %601 = vrot.lane.b32.xlu0 %v591, 24
    %v602 = vpop.permute.xlu0 %601
    %v604 = vsel %vm149, %v257, %v594
    %vm605 = vcmask 130048
    %v606 = vsel %vm605, %v604, %v598
    %vm607 = vcmask 195584
    %v608 = vsel %vm607, %v606, %v602
    %v609 = vld [vmem:[%s5] sm:$0xff]
    %v610 = vld [vmem:[%s5 + $0x8] sm:$0xff]
    %v611 = vld [vmem:[%s5 + $0x10] sm:$0xff]
    %v612 = vld [vmem:[%s5 + $0x18] sm:$0xff]
    %v613 = vpack.c.bf16 %v608, %v608
    %v614 = vpack.c.bf16 %v610, %v609
    %v615 = vpack.c.bf16 %v612, %v611
    %v616 = vld [vmem:[%s6] sm:$0x1]
    %v618 = vlaneseq
    %v619 = vshrl.u32 %v618, 7
    %v620 = vsub.s32 0, %v619
    %v621 = vrot.slane %v616, %v620
    %v624 = vsel %vm52, %v613, 0
    %626 = vmatprep.subr.bf16.mxu0 0
    %627 = vmatpush1.bf16.msra.mxu0 %v614
    %628 = vmatprep.subr.bf16.mxu0 0
    %629 = vmatpush1.bf16.msra.mxu0 %v615
    %630 = vmatprep.subr.bf16.mxu0 0
    %631 = vmatpush1.bf16.msra.mxu0 0
    %632 = vmatprep.subr.bf16.mxu0 0
    %633 = vmatpush1.bf16.msra.mxu0 0
    %634 = vmatprep.subr.bf16.mxu0 0
    %635 = vmatpush1.bf16.msra.mxu0 0
    %636 = vmatprep.subr.bf16.mxu0 0
    %637 = vmatpush1.bf16.msra.mxu0 0
    %638 = vmatprep.subr.bf16.mxu0 0
    %639 = vmatpush1.bf16.msra.mxu0 0
    %640 = vmatprep.subr.bf16.mxu0 0
    %641 = vmatpush1.bf16.msra.mxu0 0
    %642 = vmatprep.subr.bf16.mxu0 0
    %643 = vmatpush1.bf16.msra.mxu0 0
    %644 = vmatprep.subr.bf16.mxu0 0
    %645 = vmatpush1.bf16.msra.mxu0 0
    %646 = vmatprep.subr.bf16.mxu0 0
    %647 = vmatpush1.bf16.msra.mxu0 0
    %648 = vmatprep.subr.bf16.mxu0 0
    %649 = vmatpush1.bf16.msra.mxu0 0
    %650 = vmatprep.subr.bf16.mxu0 0
    %651 = vmatpush1.bf16.msra.mxu0 0
    %652 = vmatprep.subr.bf16.mxu0 0
    %653 = vmatpush1.bf16.msra.mxu0 0
    %654 = vmatprep.subr.bf16.mxu0 0
    %655 = vmatpush1.bf16.msra.mxu0 0
    %656 = vmatprep.subr.bf16.mxu0 0
    %657 = vmatpush1.bf16.msra.mxu0 0
    %658 = vmatprep.mubr.bf16.mxu0 0
    %659 = vmatmul.mubr.bf16.gmra.mrb[0].mxu0 %v624
    %v660 = vpop.f32.mrb[0].mxu0
    %v661 = vadd.f32 %v621, %v660
    %v662 = vpop.f32.mrb[0].mxu0
    %v663 = vpop.f32.mrb[0].mxu0
    %v664 = vpop.f32.mrb[0].mxu0
    %665 = vdwg.mxu0
    %v666 = vadd.f32 %v661, %v49
    %667 = vst.msk [vmem:[#allocation4] sm:$0xff] %vm52, %v666
    %v668 = vld [vmem:[%s7] sm:$0x1]
    %v669 = vld [vmem:[%s8] sm:$0x1]
    %v670 = vsel %vm52, %v666, 0.0
    %671 = vadd.xlane.f32.xlu0 %v670
    %v672 = vpop.xlane.xlu0 %671
    %v673 = vmul.f32 %v672, %v56
    %v674 = vsub.f32 %v666, %v673
    %v675 = vmul.f32 %v674, %v674
    %v676 = vsel %vm52, %v675, 0.0
    %677 = vadd.xlane.f32.xlu0 %v676
    %v678 = vpop.xlane.xlu0 %677
    %v679 = vmul.f32 %v678, %v56
    %v680 = vadd.f32 %v679, 1e-05
    %v681 = vrsqrt.pop %v680
    %v682 = vmul.f32 %v674, %v681
    %v684 = vlaneseq
    %v685 = vshrl.u32 %v684, 7
    %v686 = vsub.s32 0, %v685
    %v687 = vrot.slane %v668, %v686
    %v689 = vmul.f32 %v682, %v687
    %v691 = vlaneseq
    %v692 = vshrl.u32 %v691, 7
    %v693 = vsub.s32 0, %v692
    %v694 = vrot.slane %v669, %v693
    %v696 = vadd.f32 %v689, %v694
    %v697 = vld [vmem:[%s9] sm:$0xff]
    %v698 = vld [vmem:[%s9 + $0x8] sm:$0xff]
    %v699 = vld [vmem:[%s9 + $0x10] sm:$0xff]
    %v700 = vld [vmem:[%s9 + $0x18] sm:$0xff]
    %v701 = vpack.c.bf16 %v696, %v696
    %v702 = vpack.c.bf16 %v698, %v697
    %v703 = vpack.c.bf16 %v700, %v699
    %v704 = vld [vmem:[%s10] sm:$0x1]
    %v706 = vlaneseq
    %v707 = vshrl.u32 %v706, 7
    %v708 = vsub.s32 0, %v707
    %v709 = vrot.slane %v704, %v708
    %v712 = vsel %vm52, %v701, 0
    %714 = vmatprep.subr.bf16.mxu0 0
    %715 = vmatpush1.bf16.msra.mxu0 %v702
    %716 = vmatprep.subr.bf16.mxu0 0
    %717 = vmatpush1.bf16.msra.mxu0 %v703
    %718 = vmatprep.subr.bf16.mxu0 0
    %719 = vmatpush1.bf16.msra.mxu0 0
    %720 = vmatprep.subr.bf16.mxu0 0
    %721 = vmatpush1.bf16.msra.mxu0 0
    %722 = vmatprep.subr.bf16.mxu0 0
    %723 = vmatpush1.bf16.msra.mxu0 0
    %724 = vmatprep.subr.bf16.mxu0 0
    %725 = vmatpush1.bf16.msra.mxu0 0
    %726 = vmatprep.subr.bf16.mxu0 0
    %727 = vmatpush1.bf16.msra.mxu0 0
    %728 = vmatprep.subr.bf16.mxu0 0
    %729 = vmatpush1.bf16.msra.mxu0 0
    %730 = vmatprep.subr.bf16.mxu0 0
    %731 = vmatpush1.bf16.msra.mxu0 0
    %732 = vmatprep.subr.bf16.mxu0 0
    %733 = vmatpush1.bf16.msra.mxu0 0
    %734 = vmatprep.subr.bf16.mxu0 0
    %735 = vmatpush1.bf16.msra.mxu0 0
    %736 = vmatprep.subr.bf16.mxu0 0
    %737 = vmatpush1.bf16.msra.mxu0 0
    %738 = vmatprep.subr.bf16.mxu0 0
    %739 = vmatpush1.bf16.msra.mxu0 0
    %740 = vmatprep.subr.bf16.mxu0 0
    %741 = vmatpush1.bf16.msra.mxu0 0
    %742 = vmatprep.subr.bf16.mxu0 0
    %743 = vmatpush1.bf16.msra.mxu0 0
    %744 = vmatprep.subr.bf16.mxu0 0
    %745 = vmatpush1.bf16.msra.mxu0 0
    %746 = vmatprep.mubr.bf16.mxu0 0
    %747 = vmatmul.mubr.bf16.gmra.mrb[0].mxu0 %v712
    %v748 = vpop.f32.mrb[0].mxu0
    %v749 = vadd.f32 %v709, %v748
    %v750 = vpop.f32.mrb[0].mxu0
    %v751 = vpop.f32.mrb[0].mxu0
    %v752 = vpop.f32.mrb[0].mxu0
    %753 = vdwg.mxu0
    %v754 = vmax.f32 %v749, 0.0
    %v755 = vld [vmem:[%s11] sm:$0xff]
    %v756 = vld [vmem:[%s11 + $0x8] sm:$0xff]
    %v757 = vld [vmem:[%s11 + $0x10] sm:$0xff]
    %v758 = vld [vmem:[%s11 + $0x18] sm:$0xff]
    %v759 = vld [vmem:[%s11 + $0x20] sm:$0xff]
    %v760 = vld [vmem:[%s11 + $0x28] sm:$0xff]
    %v761 = vld [vmem:[%s11 + $0x30] sm:$0xff]
    %v762 = vld [vmem:[%s11 + $0x38] sm:$0xff]
    %v763 = vld [vmem:[%s11 + $0x40] sm:$0xff]
    %v764 = vld [vmem:[%s11 + $0x48] sm:$0xff]
    %v765 = vld [vmem:[%s11 + $0x50] sm:$0xff]
    %v766 = vld [vmem:[%s11 + $0x58] sm:$0xff]
    %v767 = vld [vmem:[%s11 + $0x60] sm:$0xff]
    %v768 = vld [vmem:[%s11 + $0x68] sm:$0xff]
    %v769 = vld [vmem:[%s11 + $0x70] sm:$0xff]
    %v770 = vld [vmem:[%s11 + $0x78] sm:$0xff]
    %v771 = vpack.c.bf16 %v754, %v754
    %v772 = vpack.c.bf16 %v756, %v755
    %v773 = vpack.c.bf16 %v758, %v757
    %v774 = vpack.c.bf16 %v760, %v759
    %v775 = vpack.c.bf16 %v762, %v761
    %v776 = vpack.c.bf16 %v764, %v763
    %v777 = vpack.c.bf16 %v766, %v765
    %v778 = vpack.c.bf16 %v768, %v767
    %v779 = vpack.c.bf16 %v770, %v769
    %v780 = vld [vmem:[%s12] sm:$0x1]
    %v782 = vlaneseq
    %v783 = vshrl.u32 %v782, 7
    %v784 = vsub.s32 0, %v783
    %v785 = vrot.slane %v780, %v784
    %787 = vmatprep.subr.bf16.mxu0 0
    %788 = vmatpush1.bf16.msra.mxu0 %v772
    %789 = vmatprep.subr.bf16.mxu0 0
    %790 = vmatpush1.bf16.msra.mxu0 %v773
    %791 = vmatprep.subr.bf16.mxu0 0
    %792 = vmatpush1.bf16.msra.mxu0 %v774
    %793 = vmatprep.subr.bf16.mxu0 0
    %794 = vmatpush1.bf16.msra.mxu0 %v775
    %795 = vmatprep.subr.bf16.mxu0 0
    %796 = vmatpush1.bf16.msra.mxu0 %v776
    %797 = vmatprep.subr.bf16.mxu0 0
    %798 = vmatpush1.bf16.msra.mxu0 %v777
    %799 = vmatprep.subr.bf16.mxu0 0
    %800 = vmatpush1.bf16.msra.mxu0 %v778
    %801 = vmatprep.subr.bf16.mxu0 0
    %802 = vmatpush1.bf16.msra.mxu0 %v779
    %803 = vmatprep.subr.bf16.mxu0 0
    %804 = vmatpush1.bf16.msra.mxu0 0
    %805 = vmatprep.subr.bf16.mxu0 0
    %806 = vmatpush1.bf16.msra.mxu0 0
    %807 = vmatprep.subr.bf16.mxu0 0
    %808 = vmatpush1.bf16.msra.mxu0 0
    %809 = vmatprep.subr.bf16.mxu0 0
    %810 = vmatpush1.bf16.msra.mxu0 0
    %811 = vmatprep.subr.bf16.mxu0 0
    %812 = vmatpush1.bf16.msra.mxu0 0
    %813 = vmatprep.subr.bf16.mxu0 0
    %814 = vmatpush1.bf16.msra.mxu0 0
    %815 = vmatprep.subr.bf16.mxu0 0
    %816 = vmatpush1.bf16.msra.mxu0 0
    %817 = vmatprep.subr.bf16.mxu0 0
    %818 = vmatpush1.bf16.msra.mxu0 0
    %819 = vmatprep.mubr.bf16.mxu0 0
    %820 = vmatmul.mubr.bf16.gmra.mrb[0].mxu0 %v771
    %v821 = vpop.f32.mrb[0].mxu0
    %v822 = vadd.f32 %v785, %v821
    %v823 = vpop.f32.mrb[0].mxu0
    %v824 = vpop.f32.mrb[0].mxu0
    %v825 = vpop.f32.mrb[0].mxu0
    %826 = vdwg.mxu0
    %v827 = vadd.f32 %v822, %v666
    %828 = vst.msk [vmem:[#allocation2] sm:$0xff] %vm52, %v827
    // Predicated region
    $region54: #{tpu_custom_call.1} parent=1 // pred_check
      _
    $region55: #{tpu_custom_call.1} parent=1 // pred_check_branch
      %830 = sbr.rel (0) target = $region57
    $region56: #{tpu_custom_call.1} parent=1 // pred_region
      %s832 = ssub.s32 128, 128
      %833 = vsyncadd [#allocation3], %s832
      %s835 = sshll.u32 [#allocation2], 4
      %s836 = int_to_ptr.vmem [resolvable:$true] %s835
      %838 = dma.vmem_to_hbm [thread:$0]  %s836, 128, %s13, [#allocation3]
    $region57: #{tpu_custom_call.1} parent=1 // pred_fallthru
      _
    // Predicated region
    $region58: #{tpu_custom_call.1} parent=1 // pred_check
      _
    $region59: #{tpu_custom_call.1} parent=1 // pred_check_branch
      %840 = sbr.rel (0) target = $region61
    $region60: #{tpu_custom_call.1} parent=1 // pred_region
      %s842 = ssub.s32 128, 128
      %843 = vsyncadd [#allocation5], %s842
      %s845 = sshll.u32 [#allocation4], 4
      %s846 = int_to_ptr.vmem [resolvable:$true] %s845
      %848 = dma.vmem_to_hbm [thread:$0]  %s846, 128, %s14, [#allocation5]
    $region61: #{tpu_custom_call.1} parent=1 // pred_fallthru
      _
    // Predicated region
    $region62: #{tpu_custom_call.1} parent=1 // pred_check
      _
    $region63: #{tpu_custom_call.1} parent=1 // pred_check_branch
      %850 = sbr.rel (0) target = $region65
    $region64: #{tpu_custom_call.1} parent=1 // pred_region
      %851 = dma.done [#allocation3], 128
    $region65: #{tpu_custom_call.1} parent=1 // pred_fallthru
      _
    // Predicated region
    $region66: #{tpu_custom_call.1} parent=1 // pred_check
      _
    $region67: #{tpu_custom_call.1} parent=1 // pred_check_branch
      %853 = sbr.rel (0) target = $region69
    $region68: #{tpu_custom_call.1} parent=1 // pred_region
      %854 = dma.done [#allocation5], 128
    $region69: #{tpu_custom_call.1} parent=1 // pred_fallthru
      _
    %855 = vsyncpa [#allocation3], 1
    %856 = vsyncpa [#allocation5], 1

</llo_original>
